<compile_context>
chip_gen: v7x
topology: tpu7x:2x2x1
jax: 0.10.0
libtpu: 0.0.40
codegen_flags: <defaults>
</compile_context>

<pallas_src>
import math

import jax
import jax.numpy as jnp
from jax import lax
from jax.experimental import pallas as pl
from jax.experimental.pallas import tpu as pltpu

_MIN_NORM = 1e-15
_MAX_NORM = 1.0 - 4e-3   # geoopt f32 ball-projection radius for c = 1


def _round_up(n, m):
    return (n + m - 1) // m * m


def _vmem_capacity_bytes():
    try:
        return int(pltpu.get_tpu_info().vmem_capacity_bytes)
    except Exception:
        return 64 * 1024 * 1024   # conservative fallback (v7x per-TC VMEM)


def _artanh(x):
    x = jnp.clip(x, -1.0 + 1e-7, 1.0 - 1e-7)
    return 0.5 * jnp.log((1.0 + x) / (1.0 - x))


def _hyperbolic_tail(mx, x_sq, b, y2):
    """Finish mobius_matvec + mobius_add(b) + ball projection (c = 1).

    mx:   (TB, O) f32  = x @ W^T
    x_sq: (TB, 1) f32  = ||x||^2 per row
    b:    (1, O)  f32  bias row
    y2:   scalar  f32  = ||b||^2
    """
    x_sq = jnp.maximum(x_sq, _MIN_NORM)
    mx_sq_raw = jnp.sum(mx * mx, axis=-1, keepdims=True)
    mx_sq = jnp.maximum(mx_sq_raw, _MIN_NORM)

    inv_x_norm = lax.rsqrt(x_sq)            # EUP
    inv_mx_norm = lax.rsqrt(mx_sq)          # EUP
    x_norm = x_sq * inv_x_norm
    mx_norm = mx_sq * inv_mx_norm

    # mobius_matvec scale: tanh(||Mx||/||x|| * artanh(||x||)) / ||Mx||
    scale = jnp.tanh(mx_norm * inv_x_norm * _artanh(x_norm)) * inv_mx_norm
    scale = jnp.where(mx_sq_raw <= _MIN_NORM, 0.0, scale)   # Mx ~ 0 -> origin

    # res = scale * mx is never materialized; its norm / dot are derived from row scalars.
    x2 = scale * scale * mx_sq_raw                            # ||res||^2 (no extra reduce)
    xy = scale * jnp.sum(mx * b, axis=-1, keepdims=True)      # <res, b>

    a_coef = 1.0 + 2.0 * xy + y2
    c_coef = 1.0 - x2
    den = 1.0 + 2.0 * xy + x2 * y2
    inv_den = 1.0 / jnp.maximum(den, _MIN_NORM)               # exact recip (cancellation)

    # ||out||^2 from row scalars only (removes the jnp.sum(out*out) wide reduce)
    num_sq = a_coef * a_coef * x2 + 2.0 * a_coef * c_coef * xy + c_coef * c_coef * y2
    out_sq = jnp.maximum(num_sq * inv_den * inv_den, _MIN_NORM)
    inv_out_norm = lax.rsqrt(out_sq)
    out_norm = out_sq * inv_out_norm
    proj = jnp.where(out_norm > _MAX_NORM, inv_out_norm * _MAX_NORM, 1.0)

    coef_mx = a_coef * scale * inv_den * proj                 # (TB, 1)
    coef_b = c_coef * inv_den * proj                          # (TB, 1)
    return coef_mx * mx + coef_b * b


def _mobius_kernel_resident(x_ref, w_ref, b_ref, y2_ref, o_ref):
    """Whole (bf16) weight resident; one grid step per batch tile."""
    x = x_ref[...]                                            # (TB, F) f32
    mx = jnp.dot(x.astype(jnp.bfloat16), w_ref[...],
                 preferred_element_type=jnp.float32)          # (TB, O) f32 acc
    x_sq = jnp.sum(x * x, axis=-1, keepdims=True)
    o_ref[...] = _hyperbolic_tail(mx, x_sq, b_ref[...], y2_ref[0, 0]).astype(o_ref.dtype)


def _mobius_kernel_ktiled(x_ref, w_ref, b_ref, y2_ref, o_ref, acc_ref, xsq_ref):
    """Feature-tiled (reduction) path for weights too large to keep resident (v7x)."""
    k = pl.program_id(1)
    x = x_ref[...]                                            # (TB, TK) f32
    part = jnp.dot(x.astype(jnp.bfloat16), w_ref[...],
                   preferred_element_type=jnp.float32)        # (TB, O)
    xs = jnp.sum(x * x, axis=-1, keepdims=True)

    @pl.when(k == 0)
    def _():
        acc_ref[...] = part
        xsq_ref[...] = xs

    @pl.when(k > 0)
    def _():
        acc_ref[...] += part
        xsq_ref[...] += xs

    @pl.when(k == pl.num_programs(1) - 1)
    def _():
        o_ref[...] = _hyperbolic_tail(acc_ref[...], xsq_ref[...], b_ref[...],
                                      y2_ref[0, 0]).astype(o_ref.dtype)


def mobius_linear_fast(x, weight_t_bf16, bias_row, y2, *, in_features, out_features,
                       tk, block_b=512):
    """Fused Mobius linear layer (curvature c = 1).

    x:             (B, F)           points inside the Poincare ball (f32)
    weight_t_bf16: (F_store, O_pad) pre-transposed, pre-padded, bf16 at rest
    bias_row:      (1, O_pad)       f32
    y2:            (1, 1)           f32, == ||b||^2 (precomputed once)
    tk:            feature tile (== F_store for the resident path)
    """
    x = x.astype(jnp.float32)
    B, F = x.shape
    assert F == in_features, (F, in_features)
    F_store, O_pad = weight_t_bf16.shape
    assert F_store % tk == 0
    nk = F_store // tk

    # ---- generation-aware VMEM budgeting / adaptive batch tile ----
    cap = _vmem_capacity_bytes()
    budget = int(cap * 0.7)
    w_bufs = 1 if nk == 1 else 2                      # resident -> single-buffered
    w_bytes = w_bufs * tk * O_pad * 2                 # bf16 weight tile(s)
    per_row = 2 * tk * 4 + 2 * O_pad * 4 + (O_pad * 4 + 512 if nk > 1 else 0)
    tb_cap = max(8, ((budget - w_bytes) // per_row) // 16 * 16)
    block_b_eff = max(8, min(block_b, tb_cap))

    if B <= block_b_eff:
        tb, b_pad = B, B                              # single batch tile, no row padding
    else:
        n_steps = -(-B // block_b_eff)
        tb = _round_up(-(-B // n_steps), 16)          # divides B_pad closely, mult of 16
        b_pad = _round_up(B, tb)
    nb = b_pad // tb

    pad_rows = b_pad - B
    pad_cols = F_store - F
    if pad_rows or pad_cols:
        x = jnp.pad(x, ((0, pad_rows), (0, pad_cols)))

    need = w_bytes + tb * per_row + O_pad * 8 + (4 << 20)
    vmem_limit = int(min(int(cap * 0.8), max(need, 32 << 20)))

    if nk == 1:
        kernel = _mobius_kernel_resident
        grid = (nb,)
        in_specs = [
            pl.BlockSpec((tb, F_store), lambda i: (i, 0)),                 # streamed x
            pl.BlockSpec((F_store, O_pad), lambda i: (0, 0),
                         pipeline_mode=pl.Buffered(1)),                    # resident W
            pl.BlockSpec((1, O_pad), lambda i: (0, 0),
                         pipeline_mode=pl.Buffered(1)),                    # resident b
            pl.BlockSpec(memory_space=pltpu.MemorySpace.SMEM),             # ||b||^2 scalar
        ]
        out_specs = pl.BlockSpec((tb, O_pad), lambda i: (i, 0))
        scratch_shapes = []
        dims = ("parallel",)
    else:
        kernel = _mobius_kernel_ktiled
        grid = (nb, nk)                                                     # reduction last
        in_specs = [
            pl.BlockSpec((tb, tk), lambda i, k: (i, k)),
            pl.BlockSpec((tk, O_pad), lambda i, k: (k, 0)),                 # streamed W tiles
            pl.BlockSpec((1, O_pad), lambda i, k: (0, 0),
                         pipeline_mode=pl.Buffered(1)),
            pl.BlockSpec(memory_space=pltpu.MemorySpace.SMEM),
        ]
        out_specs = pl.BlockSpec((tb, O_pad), lambda i, k: (i, 0))
        scratch_shapes = [pltpu.VMEM((tb, O_pad), jnp.float32),             # Mx accumulator
                          pltpu.VMEM((tb, 1), jnp.float32)]                 # ||x||^2 acc
        dims = ("parallel", "arbitrary")

    out = pl.pallas_call(
        kernel,
        out_shape=jax.ShapeDtypeStruct((b_pad, O_pad), jnp.float32),
        grid=grid,
        in_specs=in_specs,
        out_specs=out_specs,
        scratch_shapes=scratch_shapes,
        compiler_params=pltpu.CompilerParams(
            dimension_semantics=dims,
            vmem_limit_bytes=vmem_limit),
        cost_estimate=pl.CostEstimate(
            flops=2 * b_pad * F_store * O_pad + 12 * b_pad * O_pad,
            transcendentals=7 * b_pad,
            bytes_accessed=4 * b_pad * F_store + 2 * F_store * O_pad
                           + 4 * b_pad * O_pad + 4 * O_pad),
    )(x, weight_t_bf16, bias_row, y2)
    return out[:B, :out_features]


class NetHypeFast:
    """JAX/Pallas port of NetHypeFast (single MobiusLinearFast layer, c = 1)."""

    def __init__(self, n_feature, n_output, key, *, block_b=512):
        kw, kb = jax.random.split(key)
        bound = 1.0 / math.sqrt(n_feature)
        weight = jax.random.uniform(kw, (n_output, n_feature),
                                    minval=-bound, maxval=bound, dtype=jnp.float32)
        bias = jax.random.uniform(kb, (n_output,),
                                  minval=-1e-3, maxval=1e-3, dtype=jnp.float32)
        self.n_feature = n_feature
        self.n_output = n_output
        self.block_b = block_b
        self.weight = weight            # torch nn.Linear layout (O, F), kept for reference
        self.bias = bias

        # ---- one-time packing (hoisted out of the forward path) ----
        o_pad = _round_up(n_output, 128)
        cap = _vmem_capacity_bytes()
        weight_budget = int(cap * 0.7) // 2          # leave room for x / out tiles
        resident_bytes = n_feature * o_pad * 2       # bf16, single-buffered
        if resident_bytes <= weight_budget:
            tk = n_feature                           # whole weight resident; no F padding
            f_store = n_feature
        else:
            # K-tiled path: required on v7x (64 MiB VMEM) for large F*O layers
            tk = (weight_budget // (2 * o_pad * 2)) // 128 * 128
            if tk < 128:
                raise ValueError(
                    f"n_output={n_output} too large: even a (128, {o_pad}) bf16 weight "
                    f"tile exceeds the VMEM budget ({weight_budget} bytes)")
            f_store = _round_up(n_feature, tk)

        wt = jnp.pad(weight.T, ((0, f_store - n_feature), (0, o_pad - n_output)))
        self.weight_t_bf16 = wt.astype(jnp.bfloat16)     # bf16 at rest
        self.bias_row = jnp.pad(bias, (0, o_pad - n_output)).reshape(1, o_pad)
        self.y2 = jnp.sum(bias * bias).reshape(1, 1)     # ||b||^2, loop-invariant
        self.tk = tk

    def __call__(self, x):
        return mobius_linear_fast(x, self.weight_t_bf16, self.bias_row, self.y2,
                                  in_features=self.n_feature,
                                  out_features=self.n_output,
                                  tk=self.tk, block_b=self.block_b)


if __name__ == "__main__":
    key = jax.random.PRNGKey(0)
    k_model, k_x = jax.random.split(key)

    batch, n_feature, n_output = 8, 32, 16
    model = NetHypeFast(n_feature, n_output, k_model)

    # inputs must lie inside the unit Poincare ball: squash random gaussians
    raw = jax.random.normal(k_x, (batch, n_feature), dtype=jnp.float32)
    raw_norm = jnp.sqrt(jnp.sum(raw * raw, axis=-1, keepdims=True))
    x = raw / (1.0 + raw_norm) * 0.9      # ||x|| < 0.9 < 1

    out = jax.block_until_ready(model(x))
    assert out.shape == (batch, n_output), out.shape
    assert bool(jnp.all(jnp.isfinite(out)))
    print("KERNEL_OK")
</pallas_src>

<mosaic_0001>
module attributes {stable_mosaic.version = 11 : i64} {
  func.func @_mobius_kernel_resident(%arg0: i32, %arg1: memref<8x32xf32, #tpu.memory_space<vmem>>, %arg2: memref<32x128xbf16, #tpu.memory_space<vmem>>, %arg3: memref<1x128xf32, #tpu.memory_space<vmem>>, %arg4: memref<1x1xf32, #tpu.memory_space<smem>>, %arg5: memref<8x128xf32, #tpu.memory_space<vmem>>) attributes {dimension_semantics = [#tpu.dimension_semantics<parallel>], iteration_bounds = array<i64: 1>, scalar_prefetch = 0 : i64, scratch_operands = 0 : i64, tpu.core_type = #tpu.core_type<tc>, window_params = [{transform_indices = @transform_0, window_bounds = array<i64: 8, 32>}, {pipeline_mode = #tpu.pipeline_mode<synchronous>, transform_indices = @transform_1, window_bounds = array<i64: 32, 128>}, {pipeline_mode = #tpu.pipeline_mode<synchronous>, transform_indices = @transform_2, window_bounds = array<i64: 1, 128>}, {transform_indices = @transform_3, window_bounds = array<i64: 1, 1>}, {transform_indices = @transform_4, window_bounds = array<i64: 8, 128>}]} {
    %c0 = arith.constant 0 : index
    %c0_0 = arith.constant 0 : index
    %0 = vector.load %arg1[%c0, %c0_0] : memref<8x32xf32, #tpu.memory_space<vmem>>, vector<8x32xf32>
    %1 = arith.truncf %0 : vector<8x32xf32> to vector<8x32xbf16>
    %c0_1 = arith.constant 0 : index
    %c0_2 = arith.constant 0 : index
    %2 = vector.load %arg2[%c0_1, %c0_2] : memref<32x128xbf16, #tpu.memory_space<vmem>>, vector<32x128xbf16>
    %cst = arith.constant dense<0.000000e+00> : vector<8x128xf32>
    %3 = tpu.matmul %1, %2, %cst {dimension_numbers = #tpu.dot_dimension_numbers<[1], [0], [0], [1], [0, 0, 1, 1], [], []>} : vector<8x32xbf16>, vector<32x128xbf16>, vector<8x128xf32> -> vector<8x128xf32>
    %4 = arith.mulf %0, %0 : vector<8x32xf32>
    %cst_3 = arith.constant dense<0.000000e+00> : vector<8xf32>
    %5 = vector.multi_reduction <add>, %4, %cst_3 [1] : vector<8x32xf32> to vector<8xf32>
    %6 = vector.shape_cast %5 : vector<8xf32> to vector<8x1xf32>
    %c0_4 = arith.constant 0 : index
    %c0_5 = arith.constant 0 : index
    %7 = vector.load %arg3[%c0_4, %c0_5] : memref<1x128xf32, #tpu.memory_space<vmem>>, vector<1x128xf32>
    %c0_6 = arith.constant 0 : index
    %c0_7 = arith.constant 0 : index
    %8 = memref.load %arg4[%c0_6, %c0_7] : memref<1x1xf32, #tpu.memory_space<smem>>
    %cst_8 = arith.constant 1.000000e-15 : f32
    %9 = vector.broadcast %cst_8 : f32 to vector<8x1xf32>
    %10 = arith.maximumf %6, %9 : vector<8x1xf32>
    %11 = arith.mulf %3, %3 : vector<8x128xf32>
    %cst_9 = arith.constant dense<0.000000e+00> : vector<8xf32>
    %12 = vector.multi_reduction <add>, %11, %cst_9 [1] : vector<8x128xf32> to vector<8xf32>
    %13 = vector.shape_cast %12 : vector<8xf32> to vector<8x1xf32>
    %cst_10 = arith.constant 1.000000e-15 : f32
    %14 = vector.broadcast %cst_10 : f32 to vector<8x1xf32>
    %15 = arith.maximumf %13, %14 : vector<8x1xf32>
    %16 = math.rsqrt %10 : vector<8x1xf32>
    %17 = math.rsqrt %15 : vector<8x1xf32>
    %18 = arith.mulf %10, %16 : vector<8x1xf32>
    %19 = arith.mulf %15, %17 : vector<8x1xf32>
    %20 = arith.mulf %19, %16 : vector<8x1xf32>
    %cst_11 = arith.constant -0.99999988 : f32
    %cst_12 = arith.constant 0.99999988 : f32
    %21 = vector.broadcast %cst_11 : f32 to vector<8x1xf32>
    %22 = arith.maximumf %21, %18 : vector<8x1xf32>
    %23 = vector.broadcast %cst_12 : f32 to vector<8x1xf32>
    %24 = arith.minimumf %23, %22 : vector<8x1xf32>
    %cst_13 = arith.constant 1.000000e+00 : f32
    %25 = vector.broadcast %cst_13 : f32 to vector<8x1xf32>
    %26 = arith.addf %25, %24 : vector<8x1xf32>
    %cst_14 = arith.constant 1.000000e+00 : f32
    %27 = vector.broadcast %cst_14 : f32 to vector<8x1xf32>
    %28 = arith.subf %27, %24 : vector<8x1xf32>
    %29 = arith.divf %26, %28 : vector<8x1xf32>
    %30 = math.log %29 : vector<8x1xf32>
    %cst_15 = arith.constant 5.000000e-01 : f32
    %31 = vector.broadcast %cst_15 : f32 to vector<8x1xf32>
    %32 = arith.mulf %31, %30 : vector<8x1xf32>
    %33 = arith.mulf %20, %32 : vector<8x1xf32>
    %34 = math.tanh %33 : vector<8x1xf32>
    %35 = arith.mulf %34, %17 : vector<8x1xf32>
    %cst_16 = arith.constant 1.000000e-15 : f32
    %36 = vector.broadcast %cst_16 : f32 to vector<8x1xf32>
    %37 = arith.cmpf ole, %13, %36 : vector<8x1xf32>
    %cst_17 = arith.constant 0.000000e+00 : f32
    %38 = vector.broadcast %cst_17 : f32 to vector<8x1xf32>
    %39 = arith.select %37, %38, %35 : vector<8x1xi1>, vector<8x1xf32>
    %40 = arith.mulf %39, %39 : vector<8x1xf32>
    %41 = arith.mulf %40, %13 : vector<8x1xf32>
    %42 = vector.broadcast %7 : vector<1x128xf32> to vector<8x128xf32>
    %43 = arith.mulf %3, %42 : vector<8x128xf32>
    %cst_18 = arith.constant dense<0.000000e+00> : vector<8xf32>
    %44 = vector.multi_reduction <add>, %43, %cst_18 [1] : vector<8x128xf32> to vector<8xf32>
    %45 = vector.shape_cast %44 : vector<8xf32> to vector<8x1xf32>
    %46 = arith.mulf %39, %45 : vector<8x1xf32>
    %cst_19 = arith.constant 2.000000e+00 : f32
    %47 = vector.broadcast %cst_19 : f32 to vector<8x1xf32>
    %48 = arith.mulf %47, %46 : vector<8x1xf32>
    %cst_20 = arith.constant 1.000000e+00 : f32
    %49 = vector.broadcast %cst_20 : f32 to vector<8x1xf32>
    %50 = arith.addf %49, %48 : vector<8x1xf32>
    %51 = vector.broadcast %8 : f32 to vector<8x1xf32>
    %52 = arith.addf %50, %51 : vector<8x1xf32>
    %cst_21 = arith.constant 1.000000e+00 : f32
    %53 = vector.broadcast %cst_21 : f32 to vector<8x1xf32>
    %54 = arith.subf %53, %41 : vector<8x1xf32>
    %cst_22 = arith.constant 2.000000e+00 : f32
    %55 = vector.broadcast %cst_22 : f32 to vector<8x1xf32>
    %56 = arith.mulf %55, %46 : vector<8x1xf32>
    %cst_23 = arith.constant 1.000000e+00 : f32
    %57 = vector.broadcast %cst_23 : f32 to vector<8x1xf32>
    %58 = arith.addf %57, %56 : vector<8x1xf32>
    %59 = vector.broadcast %8 : f32 to vector<8x1xf32>
    %60 = arith.mulf %41, %59 : vector<8x1xf32>
    %61 = arith.addf %58, %60 : vector<8x1xf32>
    %cst_24 = arith.constant 1.000000e-15 : f32
    %62 = vector.broadcast %cst_24 : f32 to vector<8x1xf32>
    %63 = arith.maximumf %61, %62 : vector<8x1xf32>
    %cst_25 = arith.constant 1.000000e+00 : f32
    %64 = vector.broadcast %cst_25 : f32 to vector<8x1xf32>
    %65 = arith.divf %64, %63 : vector<8x1xf32>
    %66 = arith.mulf %52, %52 : vector<8x1xf32>
    %67 = arith.mulf %66, %41 : vector<8x1xf32>
    %cst_26 = arith.constant 2.000000e+00 : f32
    %68 = vector.broadcast %cst_26 : f32 to vector<8x1xf32>
    %69 = arith.mulf %68, %52 : vector<8x1xf32>
    %70 = arith.mulf %69, %54 : vector<8x1xf32>
    %71 = arith.mulf %70, %46 : vector<8x1xf32>
    %72 = arith.addf %67, %71 : vector<8x1xf32>
    %73 = arith.mulf %54, %54 : vector<8x1xf32>
    %74 = vector.broadcast %8 : f32 to vector<8x1xf32>
    %75 = arith.mulf %73, %74 : vector<8x1xf32>
    %76 = arith.addf %72, %75 : vector<8x1xf32>
    %77 = arith.mulf %76, %65 : vector<8x1xf32>
    %78 = arith.mulf %77, %65 : vector<8x1xf32>
    %cst_27 = arith.constant 1.000000e-15 : f32
    %79 = vector.broadcast %cst_27 : f32 to vector<8x1xf32>
    %80 = arith.maximumf %78, %79 : vector<8x1xf32>
    %81 = math.rsqrt %80 : vector<8x1xf32>
    %82 = arith.mulf %80, %81 : vector<8x1xf32>
    %cst_28 = arith.constant 0.995999991 : f32
    %83 = vector.broadcast %cst_28 : f32 to vector<8x1xf32>
    %84 = arith.cmpf ogt, %82, %83 : vector<8x1xf32>
    %cst_29 = arith.constant 0.995999991 : f32
    %85 = vector.broadcast %cst_29 : f32 to vector<8x1xf32>
    %86 = arith.mulf %81, %85 : vector<8x1xf32>
    %cst_30 = arith.constant 1.000000e+00 : f32
    %87 = vector.broadcast %cst_30 : f32 to vector<8x1xf32>
    %88 = arith.select %84, %86, %87 : vector<8x1xi1>, vector<8x1xf32>
    %89 = arith.mulf %52, %39 : vector<8x1xf32>
    %90 = arith.mulf %89, %65 : vector<8x1xf32>
    %91 = arith.mulf %90, %88 : vector<8x1xf32>
    %92 = arith.mulf %54, %65 : vector<8x1xf32>
    %93 = arith.mulf %92, %88 : vector<8x1xf32>
    %94 = vector.broadcast %91 : vector<8x1xf32> to vector<8x128xf32>
    %95 = arith.mulf %94, %3 : vector<8x128xf32>
    %96 = vector.broadcast %93 : vector<8x1xf32> to vector<8x128xf32>
    %97 = vector.broadcast %7 : vector<1x128xf32> to vector<8x128xf32>
    %98 = arith.mulf %96, %97 : vector<8x128xf32>
    %99 = arith.addf %95, %98 : vector<8x128xf32>
    %c0_31 = arith.constant 0 : index
    %c0_32 = arith.constant 0 : index
    %100 = vector.load %arg5[%c0_31, %c0_32] : memref<8x128xf32, #tpu.memory_space<vmem>>, vector<8x128xf32>
    tpu.vector_store %arg5[%c0_31, %c0_32], %99 {strides = array<i32>} : memref<8x128xf32, #tpu.memory_space<vmem>>, vector<8x128xf32>,
    return
  }
  func.func @transform_0(%arg0: i32) -> (i32, i32) {
    %c0_i32 = arith.constant 0 : i32
    %c0_i32_0 = arith.constant 0 : i32
    return %arg0, %c0_i32 : i32, i32
  }
  func.func @transform_1(%arg0: i32) -> (i32, i32) {
    %c0_i32 = arith.constant 0 : i32
    %c0_i32_0 = arith.constant 0 : i32
    %c0_i32_1 = arith.constant 0 : i32
    return %c0_i32, %c0_i32_0 : i32, i32
  }
  func.func @transform_2(%arg0: i32) -> (i32, i32) {
    %c0_i32 = arith.constant 0 : i32
    %c0_i32_0 = arith.constant 0 : i32
    %c0_i32_1 = arith.constant 0 : i32
    return %c0_i32, %c0_i32_0 : i32, i32
  }
  func.func @transform_3(%arg0: i32) -> (i32, i32) {
    %c0_i32 = arith.constant 0 : i32
    %c0_i32_0 = arith.constant 0 : i32
    %c0_i32_1 = arith.constant 0 : i32
    return %c0_i32, %c0_i32_0 : i32, i32
  }
  func.func @transform_4(%arg0: i32) -> (i32, i32) {
    %c0_i32 = arith.constant 0 : i32
    %c0_i32_0 = arith.constant 0 : i32
    return %arg0, %c0_i32 : i32, i32
  }
}

</mosaic_0001>

<llo_original>
// kernel: tpu_custom_call.1
$region0: #{tpu_custom_call.1}
  #allocation0 [shape = 'u32[]', space=smem, size = 0x4, offset = 0x4, fixed_abs, tag = 'smem constant byte address 0x4 - core index']
  #allocation1 [shape = 'u32[144,128]{1,0:T(1,128)}', space=vmem, size = 0x12000, scoped, tag = 'internal scratch']
  #allocation2 [shape = 'f32[1,1]{1,0:T(1,128)S(6)}', space=smem, size = 0x200, scoped, tag = 'scoped memory for tpu_custom_call.1']
  %s0 = inlined_call_operand.hbm [shape: f32[8,32], index: 0, kind: input, shape index: {}]
  %s1 = inlined_call_operand.hbm [shape: bf16[32,128], index: 1, kind: input, shape index: {}]
  %s2 = inlined_call_operand.vmem [shape: f32[1,128], index: 2, kind: input, shape index: {}]
  %s3 = inlined_call_operand.<no memory space> [shape: f32[1,1], index: 3, kind: input, shape index: {}]
  %s4 = inlined_call_operand.hbm [shape: f32[8,128], index: 4, kind: output, shape index: {}]
  %s5 = sld [smem:[#allocation0]]
  $region34: #{tpu_custom_call.1} parent=0
    _
  %s7 = ssub.s32 1, %s5
  %s8 = scalar_select 0, %s7, %s5
  %9 = sst [smem:[#allocation2]] %s3
  $region1: #{tpu_custom_call.1} parent=0
    #allocation3 [shape = 'u8[4096]{0}', space=vmem, size = 0x1000, scoped, tag = 'input window, operand 0, single buffered']
    #allocation4 [shape = 's32[1]{0}', space=sflag, size = 0x4, scoped, tag = 'scoped memory for tpu_custom_call.1']
    #allocation5 [shape = 's32[1]{0}', space=sflag, size = 0x4, scoped, tag = 'scoped memory for tpu_custom_call.1']
    #allocation6 [shape = 'u8[8192]{0}', space=vmem, size = 0x2000, scoped, tag = 'input window, operand 1, single buffered']
    #allocation7 [shape = 's32[1]{0}', space=sflag, size = 0x4, scoped, tag = 'scoped memory for tpu_custom_call.1']
    #allocation8 [shape = 'u8[4096]{0}', space=vmem, size = 0x1000, scoped, tag = 'output window, operand 0, single buffered']
    %10 = vsyncpa [#allocation4], 0
    %11 = vsyncpa [#allocation7], 0
    %12 = vsyncpa [#allocation5], 0
    // Predicated region
    $region2: #{tpu_custom_call.1} parent=1 // pred_check
      _
    $region3: #{tpu_custom_call.1} parent=1 // pred_check_branch
      %14 = sbr.rel (0) target = $region5
    $region4: #{tpu_custom_call.1} parent=1 // pred_region
      %s16 = ssub.s32 128, 128
      %17 = vsyncadd [#allocation4], %s16
      %s19 = sshll.u32 [#allocation3], 4
      %s20 = int_to_ptr.vmem [resolvable:$true] %s19
      %22 = dma.hbm_to_vmem [thread:$0]  %s0, 128, %s20, [#allocation4]
    $region5: #{tpu_custom_call.1} parent=1 // pred_fallthru
      _
    // Predicated region
    $region6: #{tpu_custom_call.1} parent=1 // pred_check
      _
    $region7: #{tpu_custom_call.1} parent=1 // pred_check_branch
      %24 = sbr.rel (0) target = $region9
    $region8: #{tpu_custom_call.1} parent=1 // pred_region
      %s26 = ssub.s32 256, 256
      %27 = vsyncadd [#allocation7], %s26
      %s28 = sshll.u32 [#allocation6], 4
      %s29 = int_to_ptr.vmem [resolvable:$true] %s28
      %34 = dma.hbm_to_vmem [thread:$0]  %s1, 256, %s29, [#allocation7], 64, 64, 4
    $region9: #{tpu_custom_call.1} parent=1 // pred_fallthru
      _
    // Predicated region
    $region10: #{tpu_custom_call.1} parent=1 // pred_check
      _
    $region11: #{tpu_custom_call.1} parent=1 // pred_check_branch
      %36 = sbr.rel (0) target = $region13
    $region12: #{tpu_custom_call.1} parent=1 // pred_region
      _
    $region13: #{tpu_custom_call.1} parent=1 // pred_fallthru
      _
    // Predicated region
    $region14: #{tpu_custom_call.1} parent=1 // pred_check
      _
    $region15: #{tpu_custom_call.1} parent=1 // pred_check_branch
      %38 = sbr.rel (0) target = $region17
    $region16: #{tpu_custom_call.1} parent=1 // pred_region
      _
    $region17: #{tpu_custom_call.1} parent=1 // pred_fallthru
      _
    // Predicated region
    $region18: #{tpu_custom_call.1} parent=1 // pred_check
      _
    $region19: #{tpu_custom_call.1} parent=1 // pred_check_branch
      %40 = sbr.rel (0) target = $region21
    $region20: #{tpu_custom_call.1} parent=1 // pred_region
      %41 = dma.done [#allocation4], 128
    $region21: #{tpu_custom_call.1} parent=1 // pred_fallthru
      _
    // Predicated region
    $region22: #{tpu_custom_call.1} parent=1 // pred_check
      _
    $region23: #{tpu_custom_call.1} parent=1 // pred_check_branch
      %43 = sbr.rel (0) target = $region25
    $region24: #{tpu_custom_call.1} parent=1 // pred_region
      %44 = dma.done [#allocation7], 256
    $region25: #{tpu_custom_call.1} parent=1 // pred_fallthru
      _
    %v46 = vld [vmem:[#allocation3] sm:$0xff]
    %v47 = vpack.c.bf16 %v46, %v46
    %v48 = vld [vmem:[#allocation6] sm:$0xf]
    %v49 = vld [vmem:[#allocation6 + $0x4] sm:$0xf]
    %v50 = vld [vmem:[#allocation6 + $0x8] sm:$0xf]
    %v51 = vld [vmem:[#allocation6 + $0xc] sm:$0xf]
    %v56 = vunpack.c.l.b16 %v48
    %v57 = vunpack.c.l.b16 %v49
    %v58 = vunpack.c.l.b16 %v50
    %v59 = vunpack.c.l.b16 %v51
    %v60 = vpack.c.b16 %v57, %v56
    %v61 = vpack.c.b16 %v59, %v58
    %vm64 = vcmask 261120
    %v66 = vsel %vm64, %v47, 0
    %68 = vmatprep.subr.bf16.mxu0 0
    %69 = vmatpush1.bf16.msra.mxu0 %v60
    %70 = vmatprep.subr.bf16.mxu0 0
    %71 = vmatpush1.bf16.msra.mxu0 %v61
    %72 = vmatprep.subr.bf16.mxu0 0
    %73 = vmatpush1.bf16.msra.mxu0 0
    %74 = vmatprep.subr.bf16.mxu0 0
    %75 = vmatpush1.bf16.msra.mxu0 0
    %76 = vmatprep.subr.bf16.mxu0 0
    %77 = vmatpush1.bf16.msra.mxu0 0
    %78 = vmatprep.subr.bf16.mxu0 0
    %79 = vmatpush1.bf16.msra.mxu0 0
    %80 = vmatprep.subr.bf16.mxu0 0
    %81 = vmatpush1.bf16.msra.mxu0 0
    %82 = vmatprep.subr.bf16.mxu0 0
    %83 = vmatpush1.bf16.msra.mxu0 0
    %84 = vmatprep.subr.bf16.mxu0 0
    %85 = vmatpush1.bf16.msra.mxu0 0
    %86 = vmatprep.subr.bf16.mxu0 0
    %87 = vmatpush1.bf16.msra.mxu0 0
    %88 = vmatprep.subr.bf16.mxu0 0
    %89 = vmatpush1.bf16.msra.mxu0 0
    %90 = vmatprep.subr.bf16.mxu0 0
    %91 = vmatpush1.bf16.msra.mxu0 0
    %92 = vmatprep.subr.bf16.mxu0 0
    %93 = vmatpush1.bf16.msra.mxu0 0
    %94 = vmatprep.subr.bf16.mxu0 0
    %95 = vmatpush1.bf16.msra.mxu0 0
    %96 = vmatprep.subr.bf16.mxu0 0
    %97 = vmatpush1.bf16.msra.mxu0 0
    %98 = vmatprep.subr.bf16.mxu0 0
    %99 = vmatpush1.bf16.msra.mxu0 0
    %100 = vmatprep.mubr.bf16.mxu0 0
    %101 = vmatmul.mubr.bf16.gmra.mrb[0].mxu0 %v66
    %v102 = vpop.f32.mrb[0].mxu0
    %v103 = vadd.f32 0.0, %v102
    %v104 = vpop.f32.mrb[0].mxu0
    %v105 = vpop.f32.mrb[0].mxu0
    %v106 = vpop.f32.mrb[0].mxu0
    %107 = vdwg.mxu0
    %v108 = vmul.f32 %v46, %v46
    %v109 = vsel %vm64, %v108, 0.0
    %110 = vadd.xlane.f32.xlu0 %v109
    %v111 = vpop.xlane.xlu0 %110
    %v112 = vld [vmem:[%s2] sm:$0x1]
    %s113 = sld [smem:[#allocation2]]
    %v114 = vmax.f32 %v111, 1e-15
    %v115 = vmul.f32 %v103, %v103
    %116 = vadd.xlane.f32.xlu0 %v115
    %v117 = vpop.xlane.xlu0 %116
    %v118 = vmax.f32 %v117, 1e-15
    %v119 = vrsqrt.pop %v114
    %v120 = vrsqrt.pop %v118
    %v121 = vmul.f32 %v114, %v119
    %v122 = vmul.f32 %v118, %v120
    %v123 = vmul.f32 %v122, %v119
    %v124 = vmax.f32 %v121, -0.9999999
    %v125 = vmin.f32 %v124, 0.9999999
    %v126 = vadd.f32 %v125, 1.0
    %v127 = vsub.f32 1.0, %v125
    %v128 = vrcp.pop %v127
    %v129 = vmul.f32 %v126, %v128
    %v130 = vlog2.pop %v129
    %v131 = vmul.f32 %v130, 0.6931472
    %v132 = vmul.f32 %v131, 0.5
    %v133 = vmul.f32 %v123, %v132
    %v134 = vtanh.pop %v133
    %v135 = vmul.f32 %v134, %v120
    %vm136 = vcmp.le.f32.partialorder %v117, 1e-15
    %v137 = vsel %vm136, 0.0, %v135
    %v138 = vmul.f32 %v137, %v137
    %v139 = vmul.f32 %v138, %v117
    %v141 = vlaneseq
    %v142 = vshrl.u32 %v141, 7
    %v143 = vsub.s32 0, %v142
    %v144 = vrot.slane %v112, %v143
    %v146 = vmul.f32 %v103, %v144
    %147 = vadd.xlane.f32.xlu0 %v146
    %v148 = vpop.xlane.xlu0 %147
    %v149 = vmul.f32 %v137, %v148
    %v150 = vmul.f32 %v149, 2.0
    %v151 = vadd.f32 %v150, 1.0
    %v152 = vstv %s113
    %v153 = vadd.f32 %v151, %v152
    %v154 = vsub.f32 1.0, %v139
    %v155 = vmul.f32 %v139, %v152
    %v156 = vadd.f32 %v151, %v155
    %v157 = vmax.f32 %v156, 1e-15
    %v158 = vrcp.pop %v157
    %v159 = vmul.f32 1.0, %v158
    %v160 = vmul.f32 %v153, %v153
    %v161 = vmul.f32 %v160, %v139
    %v162 = vmul.f32 %v153, 2.0
    %v163 = vmul.f32 %v162, %v154
    %v164 = vmul.f32 %v163, %v149
    %v165 = vadd.f32 %v161, %v164
    %v166 = vmul.f32 %v154, %v154
    %v167 = vmul.f32 %v166, %v152
    %v168 = vadd.f32 %v165, %v167
    %v169 = vmul.f32 %v168, %v159
    %v170 = vmul.f32 %v169, %v159
    %v171 = vmax.f32 %v170, 1e-15
    %v172 = vrsqrt.pop %v171
    %v173 = vmul.f32 %v171, %v172
    %vm174 = vcmp.gt.f32.partialorder %v173, 0.996
    %v175 = vmul.f32 %v172, 0.996
    %v176 = vsel %vm174, %v175, 1.0
    %v177 = vmul.f32 %v153, %v137
    %v178 = vmul.f32 %v177, %v159
    %v179 = vmul.f32 %v178, %v176
    %v180 = vmul.f32 %v154, %v159
    %v181 = vmul.f32 %v180, %v176
    %v182 = vmul.f32 %v179, %v103
    %v183 = vmul.f32 %v181, %v144
    %v184 = vadd.f32 %v182, %v183
    %185 = vst [vmem:[#allocation8] sm:$0xff] %v184
    // Predicated region
    $region26: #{tpu_custom_call.1} parent=1 // pred_check
      _
    $region27: #{tpu_custom_call.1} parent=1 // pred_check_branch
      %187 = sbr.rel (0) target = $region29
    $region28: #{tpu_custom_call.1} parent=1 // pred_region
      %s189 = ssub.s32 128, 128
      %190 = vsyncadd [#allocation5], %s189
      %s192 = sshll.u32 [#allocation8], 4
      %s193 = int_to_ptr.vmem [resolvable:$true] %s192
      %195 = dma.vmem_to_hbm [thread:$0]  %s193, 128, %s4, [#allocation5]
    $region29: #{tpu_custom_call.1} parent=1 // pred_fallthru
      _
    // Predicated region
    $region30: #{tpu_custom_call.1} parent=1 // pred_check
      _
    $region31: #{tpu_custom_call.1} parent=1 // pred_check_branch
      %197 = sbr.rel (0) target = $region33
    $region32: #{tpu_custom_call.1} parent=1 // pred_region
      %198 = dma.done [#allocation5], 128
    $region33: #{tpu_custom_call.1} parent=1 // pred_fallthru
      _
    %199 = vsyncpa [#allocation4], 1
    %200 = vsyncpa [#allocation7], 1
    %201 = vsyncpa [#allocation5], 1

</llo_original>
